<compile_context>
chip_gen: v7x
topology: tpu7x:2x2x1
jax: 0.10.0
libtpu: 0.0.40
codegen_flags: <defaults>
</compile_context>

<pallas_src>
import jax
import jax.numpy as jnp
from jax.experimental import pallas as pl
from jax.experimental.pallas import tpu as pltpu


def _copy_kernel(x_ref, o_ref):
    # Identity copy of the current tile (the reshape "hot path").
    o_ref[...] = x_ref[...]


def _round_up(v, m):
    return -(-v // m) * m


def _resolve_shape(total, shape):
    """Resolve a possible -1 in the target shape (torch.reshape semantics)."""
    shape = tuple(int(s) for s in shape)
    if -1 in shape:
        assert shape.count(-1) == 1, "only one -1 allowed in reshape target"
        known = 1
        for s in shape:
            if s != -1:
                known *= s
        assert known > 0 and total % known == 0, (
            f"cannot reshape {total} elements into shape {shape}")
        shape = tuple(total // known if s == -1 else s for s in shape)
    resolved = 1
    for s in shape:
        resolved *= s
    assert resolved == total, (
        f"cannot reshape {total} elements into shape {shape}")
    return shape


def _chip_info():
    """Best-effort chip-generation / VMEM-capacity query (safe fallbacks)."""
    kind = ""
    try:
        kind = jax.devices()[0].device_kind.lower()
    except Exception:
        pass
    is_v7 = "v7" in kind
    try:
        vmem_cap = int(pltpu.get_tpu_info().vmem_capacity_bytes)
    except Exception:
        vmem_cap = (64 if is_v7 else 128) << 20
    return is_v7, vmem_cap


def _choose_tile_rows(rows, lane, itemsize, pack, target_block_bytes, min_steps):
    """Pick a VMEM-budgeted, packing-aligned tile row count."""
    if rows <= pack:
        return rows                      # block == full dim (legal, 1 step)
    max_tile = max(pack, (target_block_bytes // (lane * itemsize)) // pack * pack)
    # Request at least `min_steps` grid steps so the DMA pipeline overlaps,
    # but never shrink the block just to manufacture extra steps.
    steps_cap = _round_up(-(-rows // min_steps), pack)
    cap = max(pack, min(max_tile, steps_cap))
    # Prefer a tile that divides rows exactly (no masked partial edge block);
    # accept at most a 2x shrink to get it.
    if rows % pack == 0:
        t = (cap // pack) * pack
        floor = max(pack, cap // 2)
        while t >= floor:
            if rows % t == 0:
                return t
            t -= pack
    return min(cap, _round_up(rows, pack))


def _pallas_copy_2d(flat, total, itemsize):
    """Lane-dense BlockSpec-pipelined copy (total is a multiple of 128)."""
    # Widest last dim (multiple of 128, up to 2048) that divides the count,
    # so wide unmasked vector stores and no padding are needed.
    lane = None
    for cand in (2048, 1024, 512, 256, 128):
        if total % cand == 0:
            lane = cand
            break
    rows = total // lane
    slab = flat.reshape(rows, lane)

    is_v7, vmem_cap = _chip_info()
    pack = max(8, 32 // itemsize)        # sublane packing: 8 f32 / 16 bf16 / 32 i8
    vmem_limit = min(48 << 20 if is_v7 else 64 << 20,
                     max(16 << 20, (vmem_cap * 3) // 4))
    target_block_bytes = min(8 << 20, vmem_limit // 4)   # in+out double-buffered

    tile_rows = _choose_tile_rows(rows, lane, itemsize, pack,
                                  target_block_bytes, min_steps=2)
    n_steps = -(-rows // tile_rows)

    def run(dim_sem):
        return pl.pallas_call(
            _copy_kernel,
            out_shape=jax.ShapeDtypeStruct((rows, lane), flat.dtype),
            grid_spec=pltpu.PrefetchScalarGridSpec(
                num_scalar_prefetch=0,
                grid=(n_steps,),
                in_specs=[pl.BlockSpec((tile_rows, lane), lambda i: (i, 0))],
                out_specs=pl.BlockSpec((tile_rows, lane), lambda i: (i, 0)),
            ),
            compiler_params=pltpu.CompilerParams(
                dimension_semantics=dim_sem,
                vmem_limit_bytes=vmem_limit,
            ),
            cost_estimate=pl.CostEstimate(
                flops=0, transcendentals=0,
                bytes_accessed=2 * total * itemsize,
            ),
        )(slab)

    if is_v7 and n_steps >= 2 and n_steps % 2 == 0:
        # Explicitly shard the copy across both v7x TensorCores.
        try:
            return run((pltpu.CORE_PARALLEL,))
        except Exception:
            pass                          # fall back to a plain parallel axis
    return run(("parallel",))


def _pallas_copy_dma(flat, total, itemsize):
    """Ragged totals: direct HBM->HBM DMA chunks, no VMEM staging, no pad."""
    bytes_total = total * itemsize
    if bytes_total >= (8 << 20):
        n_chunks = 4                      # keep several DMAs outstanding
    elif bytes_total >= (1 << 20):
        n_chunks = 2
    else:
        n_chunks = 1
    align = max(1, 512 // itemsize)       # align chunk starts for the DMA engine
    chunk = _round_up(-(-total // n_chunks), align)
    bounds = []
    start = 0
    while start < total:
        size = min(chunk, total - start)
        bounds.append((start, size))      # all static Python ints
        start += size
    n_chunks = len(bounds)

    def kernel(x_hbm, o_hbm, sems):
        copies = []
        for k, (s, sz) in enumerate(bounds):
            cp = pltpu.make_async_copy(x_hbm.at[pl.ds(s, sz)],
                                       o_hbm.at[pl.ds(s, sz)],
                                       sems.at[k])
            cp.start()
            copies.append(cp)
        for cp in copies:
            cp.wait()

    return pl.pallas_call(
        kernel,
        out_shape=jax.ShapeDtypeStruct((total,), flat.dtype),
        in_specs=[pl.BlockSpec(memory_space=pl.ANY)],
        out_specs=pl.BlockSpec(memory_space=pl.ANY),
        scratch_shapes=[pltpu.SemaphoreType.DMA((n_chunks,))],
        cost_estimate=pl.CostEstimate(
            flops=0, transcendentals=0,
            bytes_accessed=2 * total * itemsize,
        ),
    )(flat)


def pallas_reshape(x, shape, *, materialize=True):
    """Reshape `x` to `shape` (torch.reshape semantics). If `materialize`,
    move the bytes through a Pallas copy; otherwise metadata-only reshape."""
    total = int(x.size)
    shape = _resolve_shape(total, tuple(shape))

    if not materialize or total == 0:
        # Contiguous reshape is metadata-only; no HBM traffic needed.
        return jnp.reshape(x, shape)

    itemsize = jnp.dtype(x.dtype).itemsize
    flat = x.reshape(-1)                  # metadata-only flatten
    if total % 128 == 0:
        out = _pallas_copy_2d(flat, total, itemsize)
    else:
        out = _pallas_copy_dma(flat, total, itemsize)
    return out.reshape(shape)


class Reshape:
    """Pallas equivalent of WaveGAN's nn.Module Reshape."""

    def __init__(self, shape):
        self.shape = tuple(shape)

    def __call__(self, x):
        return pallas_reshape(x, self.shape)


if __name__ == "__main__":
    key = jax.random.PRNGKey(0)
    k1, k2, k3, k4 = jax.random.split(key, 4)

    # WaveGAN-style: reshape a small feature map (N, C, H, W) -> (N, C*H, W).
    x = jax.random.normal(k1, (2, 4, 16, 16), dtype=jnp.float32)
    target_shape = (2, 64, 16)
    mod = Reshape(target_shape)
    y = jax.block_until_ready(mod(x))
    ref = jnp.reshape(x, target_shape)
    assert y.shape == target_shape and y.dtype == x.dtype
    assert jnp.array_equal(y, ref), "Pallas reshape mismatch"

    # -1 resolution and the metadata-only fast path.
    y2 = jax.block_until_ready(pallas_reshape(x, (2, -1)))
    assert jnp.array_equal(y2, jnp.reshape(x, (2, -1)))
    assert jnp.array_equal(pallas_reshape(x, target_shape, materialize=False), ref)

    # Multi-step grid path (rows split across >= 2 pipelined blocks).
    x2 = jax.random.normal(k2, (4, 16, 32, 32), dtype=jnp.float32)
    y3 = jax.block_until_ready(pallas_reshape(x2, (4, 512, 32)))
    assert jnp.array_equal(y3, jnp.reshape(x2, (4, 512, 32)))

    # Sub-32-bit dtype (bf16 sublane packing = 16).
    x3 = jax.random.normal(k3, (2, 4, 8, 8), dtype=jnp.float32).astype(jnp.bfloat16)
    y4 = jax.block_until_ready(pallas_reshape(x3, (2, 256)))
    assert jnp.array_equal(y4, jnp.reshape(x3, (2, 256)))

    # Ragged element count (105 elements): HBM->HBM DMA path, no pad/slice.
    x4 = jax.random.normal(k4, (3, 5, 7), dtype=jnp.float32)
    y5 = jax.block_until_ready(pallas_reshape(x4, (5, 21)))
    assert jnp.array_equal(y5, jnp.reshape(x4, (5, 21)))

    print("KERNEL_OK")
</pallas_src>

<mosaic_0001>
module attributes {stable_mosaic.version = 11 : i64} {
  func.func @_copy_kernel(%arg0: i32, %arg1: memref<1x2048xf32, #tpu.memory_space<vmem>>, %arg2: memref<1x2048xf32, #tpu.memory_space<vmem>>) attributes {dimension_semantics = [#tpu.dimension_semantics<parallel>], iteration_bounds = array<i64: 1>, scalar_prefetch = 0 : i64, scratch_operands = 0 : i64, tpu.core_type = #tpu.core_type<tc>, window_params = [{transform_indices = @transform_0, window_bounds = array<i64: 1, 2048>}, {transform_indices = @transform_1, window_bounds = array<i64: 1, 2048>}]} {
    %c0 = arith.constant 0 : index
    %c0_0 = arith.constant 0 : index
    %0 = vector.load %arg1[%c0, %c0_0] : memref<1x2048xf32, #tpu.memory_space<vmem>>, vector<1x2048xf32>
    %c0_1 = arith.constant 0 : index
    %c0_2 = arith.constant 0 : index
    %1 = vector.load %arg2[%c0_1, %c0_2] : memref<1x2048xf32, #tpu.memory_space<vmem>>, vector<1x2048xf32>
    tpu.vector_store %arg2[%c0_1, %c0_2], %0 {strides = array<i32>} : memref<1x2048xf32, #tpu.memory_space<vmem>>, vector<1x2048xf32>,
    return
  }
  func.func @transform_0(%arg0: i32) -> (i32, i32) {
    %c0_i32 = arith.constant 0 : i32
    %c0_i32_0 = arith.constant 0 : i32
    return %arg0, %c0_i32 : i32, i32
  }
  func.func @transform_1(%arg0: i32) -> (i32, i32) {
    %c0_i32 = arith.constant 0 : i32
    %c0_i32_0 = arith.constant 0 : i32
    return %arg0, %c0_i32 : i32, i32
  }
}

</mosaic_0001>

<llo_original>
// kernel: tpu_custom_call.1
$region0: #{tpu_custom_call.1}
  #allocation0 [shape = 'u32[]', space=smem, size = 0x4, offset = 0x4, fixed_abs, tag = 'smem constant byte address 0x4 - core index']
  #allocation1 [shape = 'u32[144,128]{1,0:T(1,128)}', space=vmem, size = 0x12000, scoped, tag = 'internal scratch']
  %s0 = inlined_call_operand.hbm [shape: f32[1,2048], index: 0, kind: input, shape index: {}]
  %s1 = inlined_call_operand.hbm [shape: f32[1,2048], index: 1, kind: output, shape index: {}]
  %s2 = sld [smem:[#allocation0]]
  $region18: #{tpu_custom_call.1} parent=0
    _
  %s4 = ssub.s32 1, %s2
  %s5 = scalar_select 0, %s4, %s2
  $region1: #{tpu_custom_call.1} parent=0
    #allocation2 [shape = 'u8[8192]{0}', space=vmem, size = 0x2000, scoped, tag = 'input window, operand 0, single buffered']
    #allocation3 [shape = 's32[1]{0}', space=sflag, size = 0x4, scoped, tag = 'scoped memory for tpu_custom_call.1']
    #allocation4 [shape = 's32[1]{0}', space=sflag, size = 0x4, scoped, tag = 'scoped memory for tpu_custom_call.1']
    #allocation5 [shape = 'u8[8192]{0}', space=vmem, size = 0x2000, scoped, tag = 'output window, operand 0, single buffered']
    %6 = vsyncpa [#allocation3], 0
    %7 = vsyncpa [#allocation4], 0
    // Predicated region
    $region2: #{tpu_custom_call.1} parent=1 // pred_check
      _
    $region3: #{tpu_custom_call.1} parent=1 // pred_check_branch
      %9 = sbr.rel (0) target = $region5
    $region4: #{tpu_custom_call.1} parent=1 // pred_region
      %s11 = ssub.s32 256, 256
      %12 = vsyncadd [#allocation3], %s11
      %s14 = sshll.u32 [#allocation2], 4
      %s15 = int_to_ptr.vmem [resolvable:$true] %s14
      %17 = dma.hbm_to_vmem [thread:$0]  %s0, 256, %s15, [#allocation3]
    $region5: #{tpu_custom_call.1} parent=1 // pred_fallthru
      _
    // Predicated region
    $region6: #{tpu_custom_call.1} parent=1 // pred_check
      _
    $region7: #{tpu_custom_call.1} parent=1 // pred_check_branch
      %19 = sbr.rel (0) target = $region9
    $region8: #{tpu_custom_call.1} parent=1 // pred_region
      %20 = dma.done [#allocation3], 256
    $region9: #{tpu_custom_call.1} parent=1 // pred_fallthru
      _
    %v21 = vld [vmem:[#allocation2] sm:$0xff]
    %v22 = vld [vmem:[#allocation2 + $0x8] sm:$0xff]
    %23 = vst [vmem:[#allocation5] sm:$0xff] %v21
    %24 = vst [vmem:[#allocation5 + $0x8] sm:$0xff] %v22
    // Predicated region
    $region10: #{tpu_custom_call.1} parent=1 // pred_check
      _
    $region11: #{tpu_custom_call.1} parent=1 // pred_check_branch
      %26 = sbr.rel (0) target = $region13
    $region12: #{tpu_custom_call.1} parent=1 // pred_region
      %s28 = ssub.s32 256, 256
      %29 = vsyncadd [#allocation4], %s28
      %s31 = sshll.u32 [#allocation5], 4
      %s32 = int_to_ptr.vmem [resolvable:$true] %s31
      %34 = dma.vmem_to_hbm [thread:$0]  %s32, 256, %s1, [#allocation4]
    $region13: #{tpu_custom_call.1} parent=1 // pred_fallthru
      _
    // Predicated region
    $region14: #{tpu_custom_call.1} parent=1 // pred_check
      _
    $region15: #{tpu_custom_call.1} parent=1 // pred_check_branch
      %36 = sbr.rel (0) target = $region17
    $region16: #{tpu_custom_call.1} parent=1 // pred_region
      %37 = dma.done [#allocation4], 256
    $region17: #{tpu_custom_call.1} parent=1 // pred_fallthru
      _
    %38 = vsyncpa [#allocation3], 1
    %39 = vsyncpa [#allocation4], 1

</llo_original>
